<compile_context>
chip_gen: v7x
topology: tpu7x:2x2x1
jax: 0.10.0
libtpu: 0.0.40
codegen_flags: <defaults>
</compile_context>

<pallas_src>
import jax
import jax.numpy as jnp
from jax.experimental import pallas as pl
from jax.experimental.pallas import tpu as pltpu


def _rnn_dropout_kernel(mask_ref, x_ref, o_ref):
    # mask block: (1, TN); x / o blocks: (T, TN).
    # The mask broadcasts over the seq_len rows of the tile, matching the
    # (1, B, H) mask of the PyTorch module.
    o_ref[...] = x_ref[...] * mask_ref[...]


def _vmem_capacity_bytes():
    """Physical VMEM of the current TPU; conservative 64 MiB (v7x) fallback."""
    try:
        info = pltpu.get_tpu_info()
        for name in ("vmem_capacity_bytes", "vmem_bytes", "vmem_size_bytes"):
            cap = getattr(info, name, None)
            if cap:
                return int(cap)
    except Exception:
        pass
    return 64 * 1024 * 1024


def rnn_dropout(x, seed, p=0.5, training=True):
    """Pallas implementation of RNNDropout.forward.

    x: (seq_len, batch, hidden). Returns x * mask, where mask ~ Bernoulli(1-p)/(1-p)
    has shape (1, batch, hidden) and is shared across the seq_len axis.
    `seed` must be fresh per training step or the dropout mask repeats.
    """
    if (not training) or (p == 0.0):
        return x
    if p >= 1.0:
        # keep_prob == 0: every element dropped (avoid 1/0 NaN mask).
        return jnp.zeros_like(x)

    S, B, H = x.shape
    N = B * H
    keep_prob = 1.0 - p
    itemsize = jnp.dtype(x.dtype).itemsize

    # Shared dropout mask, shape (1, N); generated once outside the kernel.
    # TODO(synk): torch's in-place bernoulli_ RNG stream is not reproduced;
    # jax.random gives an equivalent-distribution mask.
    key = jax.random.PRNGKey(seed)
    keep = jax.random.bernoulli(key, p=keep_prob, shape=(1, N))
    mask = keep.astype(x.dtype) / jnp.asarray(keep_prob, dtype=x.dtype)

    # Lane-dense 2-D layout: (seq_len, batch*hidden), padded to 128 lanes so
    # output stores are full-width (unmasked vst).
    x2d = x.reshape(S, N)
    Npad = ((N + 127) // 128) * 128
    if Npad != N:
        x2d = jnp.pad(x2d, ((0, 0), (0, Npad - N)))
        mask = jnp.pad(mask, ((0, 0), (0, Npad - N)), constant_values=1)

    # --- Generation-aware tile sizing -------------------------------------
    # Live pipelined footprint ~= 2x(x tile) + 2x(out tile) + mask, so budget
    # each tile at ~1/6 of the scoped VMEM we request.  The scoped request is
    # capped at 48 MiB (fits v7x's 64 MiB physical with headroom) and at 3/4
    # of physical VMEM, and is passed via vmem_limit_bytes so v5e's 16 MiB
    # default does not clamp us.
    phys_vmem = _vmem_capacity_bytes()
    scoped_budget = min(phys_vmem * 3 // 4, 48 * 1024 * 1024)
    target_tile_bytes = min(8 * 1024 * 1024, scoped_budget // 6)

    sublane = 8 if itemsize >= 4 else (16 if itemsize == 2 else 32)

    # Lane (N) tile: multiple of 128, small enough that even a sublane-high
    # slab fits the per-tile budget (handles very wide B*H).
    max_cols = max(128, (target_tile_bytes // (sublane * itemsize)) // 128 * 128)
    TN = min(Npad, max_cols)

    # Sublane (seq_len) tile: as many sublane-full rows as fit the budget.
    row_bytes = TN * itemsize
    target_rows = max(1, target_tile_bytes // row_bytes)
    if target_rows >= S:
        T = S                      # whole seq axis in one tile
    else:
        T = max(sublane, (target_rows // sublane) * sublane)

    grid = (pl.cdiv(S, T), pl.cdiv(Npad, TN))

    out2d = pl.pallas_call(
        _rnn_dropout_kernel,
        out_shape=jax.ShapeDtypeStruct((S, Npad), x.dtype),
        grid=grid,
        in_specs=[
            # mask: resident along the seq axis (constant block index i),
            # follows the lane-tile index j.
            pl.BlockSpec((1, TN), lambda i, j: (0, j)),
            pl.BlockSpec((T, TN), lambda i, j: (i, j)),
        ],
        out_specs=pl.BlockSpec((T, TN), lambda i, j: (i, j)),
        # Output reuses x2d's HBM buffer; x is dead after dropout.
        input_output_aliases={1: 0},
        compiler_params=pltpu.CompilerParams(
            # Both axes independent -> shardable across TensorCores.
            # (On v7x consider pltpu.CORE_PARALLEL if only one TC is busy.)
            dimension_semantics=("parallel", "parallel"),
            vmem_limit_bytes=int(scoped_budget),
        ),
        cost_estimate=pl.CostEstimate(
            flops=S * Npad,
            transcendentals=0,
            bytes_accessed=(2 * S * Npad + Npad) * itemsize,
        ),
    )(mask, x2d)

    if Npad != N:
        out2d = out2d[:, :N]
    return out2d.reshape(S, B, H)


if __name__ == "__main__":
    # Small shapes consistent with an RNN activation: (seq_len, batch, hidden).
    S, B, H = 8, 4, 128
    key = jax.random.PRNGKey(0)
    x = jax.random.normal(key, (S, B, H), dtype=jnp.float32)

    p = 0.5
    out = rnn_dropout(x, seed=42, p=p, training=True)
    out = jax.block_until_ready(out)

    # Sanity checks of the RNNDropout semantics:
    # 1) mask is shared along seq_len: out/x ratio identical for every timestep.
    ratio = jnp.where(jnp.abs(x) > 1e-6, out / x, jnp.nan)
    r0 = ratio[0]
    same_along_seq = jnp.all(
        jnp.where(jnp.isnan(ratio), True, jnp.abs(ratio - r0[None]) < 1e-5)
    )
    # 2) surviving elements are scaled by 1/(1-p), dropped elements are exactly 0.
    vals_ok = jnp.all(
        jnp.where(
            jnp.isnan(ratio),
            True,
            (jnp.abs(ratio - 1.0 / (1.0 - p)) < 1e-5) | (jnp.abs(ratio) < 1e-6),
        )
    )
    # 3) eval / p==0 path is identity.
    eval_ok = jnp.array_equal(rnn_dropout(x, seed=42, p=p, training=False), x)
    # 4) p == 1.0 drops everything (no NaN from 1/keep_prob).
    p1_ok = jnp.array_equal(
        rnn_dropout(x, seed=42, p=1.0, training=True), jnp.zeros_like(x)
    )

    assert bool(same_along_seq), "mask not consistent along seq_len"
    assert bool(vals_ok), "mask values are not {0, 1/(1-p)}"
    assert bool(eval_ok), "eval path should be identity"
    assert bool(p1_ok), "p=1.0 should zero the output"

    print("KERNEL_OK")
</pallas_src>

<mosaic_0001>
module attributes {stable_mosaic.version = 11 : i64} {
  func.func @_rnn_dropout_kernel(%arg0: i32, %arg1: i32, %arg2: memref<1x512xf32, #tpu.memory_space<vmem>>, %arg3: memref<8x512xf32, #tpu.memory_space<vmem>>, %arg4: memref<8x512xf32, #tpu.memory_space<vmem>>) attributes {dimension_semantics = [#tpu.dimension_semantics<parallel>, #tpu.dimension_semantics<parallel>], iteration_bounds = array<i64: 1, 1>, scalar_prefetch = 0 : i64, scratch_operands = 0 : i64, tpu.core_type = #tpu.core_type<tc>, window_params = [{transform_indices = @transform_0, window_bounds = array<i64: 1, 512>}, {transform_indices = @transform_1, window_bounds = array<i64: 8, 512>}, {transform_indices = @transform_2, window_bounds = array<i64: 8, 512>}]} {
    %c0 = arith.constant 0 : index
    %c0_0 = arith.constant 0 : index
    %0 = vector.load %arg3[%c0, %c0_0] : memref<8x512xf32, #tpu.memory_space<vmem>>, vector<8x512xf32>
    %c0_1 = arith.constant 0 : index
    %c0_2 = arith.constant 0 : index
    %1 = vector.load %arg2[%c0_1, %c0_2] : memref<1x512xf32, #tpu.memory_space<vmem>>, vector<1x512xf32>
    %2 = vector.broadcast %1 : vector<1x512xf32> to vector<8x512xf32>
    %3 = arith.mulf %0, %2 : vector<8x512xf32>
    %c0_3 = arith.constant 0 : index
    %c0_4 = arith.constant 0 : index
    %4 = vector.load %arg4[%c0_3, %c0_4] : memref<8x512xf32, #tpu.memory_space<vmem>>, vector<8x512xf32>
    tpu.vector_store %arg4[%c0_3, %c0_4], %3 {strides = array<i32>} : memref<8x512xf32, #tpu.memory_space<vmem>>, vector<8x512xf32>,
    return
  }
  func.func @transform_0(%arg0: i32, %arg1: i32) -> (i32, i32) {
    %c0_i32 = arith.constant 0 : i32
    %c0_i32_0 = arith.constant 0 : i32
    return %c0_i32, %arg1 : i32, i32
  }
  func.func @transform_1(%arg0: i32, %arg1: i32) -> (i32, i32) {
    %c0_i32 = arith.constant 0 : i32
    return %arg0, %arg1 : i32, i32
  }
  func.func @transform_2(%arg0: i32, %arg1: i32) -> (i32, i32) {
    %c0_i32 = arith.constant 0 : i32
    return %arg0, %arg1 : i32, i32
  }
}

</mosaic_0001>

<llo_original>
// kernel: tpu_custom_call.1
$region0: #{tpu_custom_call.1}
  #allocation0 [shape = 'u32[]', space=smem, size = 0x4, offset = 0x4, fixed_abs, tag = 'smem constant byte address 0x4 - core index']
  #allocation1 [shape = 'u32[144,128]{1,0:T(1,128)}', space=vmem, size = 0x12000, scoped, tag = 'internal scratch']
  %s0 = inlined_call_operand.vmem [shape: f32[1,512], index: 0, kind: input, shape index: {}]
  %s1 = inlined_call_operand.hbm [shape: f32[8,512], index: 1, kind: input, shape index: {}, may-alias: {1,2}]
  %s2 = inlined_call_operand.hbm [shape: f32[8,512], index: 2, kind: output, shape index: {}, may-alias: {1,2}]
  %s3 = sld [smem:[#allocation0]]
  $region22: #{tpu_custom_call.1} parent=0
    _
  %s5 = ssub.s32 1, %s3
  %s6 = scalar_select 0, %s5, %s3
  $region1: #{tpu_custom_call.1} parent=0
    #allocation2 [shape = 'u8[16384]{0}', space=vmem, size = 0x4000, scoped, tag = 'input window, operand 1, single buffered']
    #allocation3 [shape = 's32[1]{0}', space=sflag, size = 0x4, scoped, tag = 'scoped memory for tpu_custom_call.1']
    #allocation4 [shape = 's32[1]{0}', space=sflag, size = 0x4, scoped, tag = 'scoped memory for tpu_custom_call.1']
    #allocation5 [shape = 'u8[16384]{0}', space=vmem, size = 0x4000, scoped, tag = 'output window, operand 0, single buffered']
    %7 = vsyncpa [#allocation3], 0
    %8 = vsyncpa [#allocation4], 0
    // Predicated region
    $region2: #{tpu_custom_call.1} parent=1 // pred_check
      _
    $region3: #{tpu_custom_call.1} parent=1 // pred_check_branch
      %10 = sbr.rel (0) target = $region5
    $region4: #{tpu_custom_call.1} parent=1 // pred_region
      _
    $region5: #{tpu_custom_call.1} parent=1 // pred_fallthru
      _
    // Predicated region
    $region6: #{tpu_custom_call.1} parent=1 // pred_check
      _
    $region7: #{tpu_custom_call.1} parent=1 // pred_check_branch
      %12 = sbr.rel (0) target = $region9
    $region8: #{tpu_custom_call.1} parent=1 // pred_region
      %s14 = ssub.s32 512, 512
      %15 = vsyncadd [#allocation3], %s14
      %s17 = sshll.u32 [#allocation2], 4
      %s18 = int_to_ptr.vmem [resolvable:$true] %s17
      %20 = dma.hbm_to_vmem [thread:$0]  %s1, 512, %s18, [#allocation3]
    $region9: #{tpu_custom_call.1} parent=1 // pred_fallthru
      _
    // Predicated region
    $region10: #{tpu_custom_call.1} parent=1 // pred_check
      _
    $region11: #{tpu_custom_call.1} parent=1 // pred_check_branch
      %22 = sbr.rel (0) target = $region13
    $region12: #{tpu_custom_call.1} parent=1 // pred_region
      %23 = dma.done [#allocation3], 512
    $region13: #{tpu_custom_call.1} parent=1 // pred_fallthru
      _
    %v24 = vld [vmem:[#allocation2] sm:$0xff]
    %v25 = vld [vmem:[#allocation2 + $0x8] sm:$0xff]
    %v26 = vld [vmem:[#allocation2 + $0x10] sm:$0xff]
    %v27 = vld [vmem:[#allocation2 + $0x18] sm:$0xff]
    %v28 = vld [vmem:[%s0] sm:$0xf]
    %v30 = vlaneseq
    %v31 = vshrl.u32 %v30, 7
    %v32 = vsub.s32 0, %v31
    %v33 = vrot.slane %v28, %v32
    %v34 = vlaneseq
    %v35 = vshrl.u32 %v34, 7
    %v36 = vsub.s32 1, %v35
    %v37 = vrot.slane %v28, %v36
    %v38 = vlaneseq
    %v39 = vshrl.u32 %v38, 7
    %v40 = vsub.s32 2, %v39
    %v41 = vrot.slane %v28, %v40
    %v42 = vlaneseq
    %v43 = vshrl.u32 %v42, 7
    %v44 = vsub.s32 3, %v43
    %v45 = vrot.slane %v28, %v44
    %v50 = vmul.f32 %v24, %v33
    %v51 = vmul.f32 %v25, %v37
    %v52 = vmul.f32 %v26, %v41
    %v53 = vmul.f32 %v27, %v45
    %54 = vst [vmem:[#allocation5] sm:$0xff] %v50
    %55 = vst [vmem:[#allocation5 + $0x8] sm:$0xff] %v51
    %56 = vst [vmem:[#allocation5 + $0x10] sm:$0xff] %v52
    %57 = vst [vmem:[#allocation5 + $0x18] sm:$0xff] %v53
    // Predicated region
    $region14: #{tpu_custom_call.1} parent=1 // pred_check
      _
    $region15: #{tpu_custom_call.1} parent=1 // pred_check_branch
      %59 = sbr.rel (0) target = $region17
    $region16: #{tpu_custom_call.1} parent=1 // pred_region
      %s61 = ssub.s32 512, 512
      %62 = vsyncadd [#allocation4], %s61
      %s64 = sshll.u32 [#allocation5], 4
      %s65 = int_to_ptr.vmem [resolvable:$true] %s64
      %67 = dma.vmem_to_hbm [thread:$0]  %s65, 512, %s2, [#allocation4]
    $region17: #{tpu_custom_call.1} parent=1 // pred_fallthru
      _
    // Predicated region
    $region18: #{tpu_custom_call.1} parent=1 // pred_check
      _
    $region19: #{tpu_custom_call.1} parent=1 // pred_check_branch
      %69 = sbr.rel (0) target = $region21
    $region20: #{tpu_custom_call.1} parent=1 // pred_region
      %70 = dma.done [#allocation4], 512
    $region21: #{tpu_custom_call.1} parent=1 // pred_fallthru
      _
    %71 = vsyncpa [#allocation3], 1
    %72 = vsyncpa [#allocation4], 1

</llo_original>
